<compile_context>
chip_gen: v7x
topology: tpu7x:2x2x1
jax: 0.10.0
libtpu: 0.0.40
codegen_flags: <defaults>
</compile_context>

<pallas_src>
import jax
import jax.numpy as jnp
from jax.experimental import pallas as pl
from jax.experimental.pallas import tpu as pltpu


def dgi_kernel(x_ref, adj_ref, w0_ref, b0_ref, w1_ref, b1_ref, w2_ref, b2_ref,
               wbT_ref, alpha_ref, bb_ref, out_ref):
    """Fused DGI forward.

    x_ref   : [2N, F] bf16   -- seq1 and seq2 row-stacked along the node axis
    adj_ref : [N, N]  bf16   -- normalized adjacency (shared by both branches)
    w*_ref  : bf16 GCN weights ; b*_ref : [1, H] f32 biases
    wbT_ref : [H, H]  bf16   -- bilinear weight, pre-transposed (Wb^T)
    alpha_ref, bb_ref : (1, 1) f32 scalars in SMEM (PReLU slope, bilinear bias)
    out_ref : [2N, 1] f32    -- logits (sc_1 rows then sc_2 rows)
    """
    alpha = alpha_ref[0, 0]
    adj = adj_ref[...]                # stays resident; reused by all six A-dots
    n = adj.shape[0]

    def prelu(h):
        return jnp.where(h >= 0, h, alpha * h)

    def gcn_layer(h2_bf, w_ref, b_ref):
        # One row-stacked weight dot for both branches, then two A-dots that
        # reuse the same [N, N] adjacency tile (no block-diag structural zeros).
        xw = jnp.dot(h2_bf, w_ref[...], preferred_element_type=jnp.float32)
        ax_pos = jnp.dot(adj, xw[:n].astype(jnp.bfloat16),
                         preferred_element_type=jnp.float32)
        ax_neg = jnp.dot(adj, xw[n:].astype(jnp.bfloat16),
                         preferred_element_type=jnp.float32)
        return jnp.concatenate([ax_pos, ax_neg], axis=0) + b_ref[...]

    # 3-layer GCN over both branches at once (row-stacked node axis).
    h = prelu(gcn_layer(x_ref[...], w0_ref, b0_ref))
    h = prelu(gcn_layer(h.astype(jnp.bfloat16), w1_ref, b1_ref))
    h = gcn_layer(h.astype(jnp.bfloat16), w2_ref, b2_ref)        # [2N, H] f32

    # AvgReadout (msk=None): mean over the TRUE node count of the positive
    # branch (no row padding exists), then an exact sigmoid (EUP exp + divide).
    c = jnp.mean(h[:n], axis=0, keepdims=True)                   # [1, H]
    c = 1.0 / (1.0 + jnp.exp(-c))

    # v = Wb @ c, computed transpose-free as c_row @ Wb^T (pre-transposed).
    v = jnp.dot(c.astype(jnp.bfloat16), wbT_ref[...],
                preferred_element_type=jnp.float32)               # [1, H]

    # Bilinear scores sc_i = <h_i, v> + bb : VPU multiply + lane reduce.
    sc = jnp.sum(h * v, axis=1, keepdims=True)                    # [2N, 1]
    out_ref[...] = sc + bb_ref[0, 0]


def prepare_dgi_operands(adj, params):
    """One-time (per-model) preparation: bf16 casts and the Wb transpose.

    Keeping this out of the per-step call removes the eager cast/transpose
    dispatch chain that dominated wall time at toy sizes.
    """
    return {
        "adj": adj.astype(jnp.bfloat16),
        "w0": params["w0"].astype(jnp.bfloat16),
        "b0": params["b0"].astype(jnp.float32),
        "w1": params["w1"].astype(jnp.bfloat16),
        "b1": params["b1"].astype(jnp.float32),
        "w2": params["w2"].astype(jnp.bfloat16),
        "b2": params["b2"].astype(jnp.float32),
        "wbT": params["wb"].T.astype(jnp.bfloat16),
        "alpha": params["alpha"].astype(jnp.float32),
        "bb": params["bb"].astype(jnp.float32),
    }


@jax.jit
def dgi_forward(seq1, seq2, ops):
    """DGI forward: logits = cat(sc_1, sc_2), shape [2N]."""
    N = seq1.shape[0]
    x2 = jnp.concatenate([seq1, seq2], axis=0).astype(jnp.bfloat16)   # [2N, F]

    vspec = pl.BlockSpec(memory_space=pltpu.MemorySpace.VMEM)
    sspec = pl.BlockSpec(memory_space=pltpu.MemorySpace.SMEM)

    out = pl.pallas_call(
        dgi_kernel,
        out_shape=jax.ShapeDtypeStruct((2 * N, 1), jnp.float32),
        in_specs=[vspec, vspec,                               # x2, adj
                  vspec, vspec, vspec, vspec, vspec, vspec,   # w0,b0,w1,b1,w2,b2
                  vspec,                                      # wbT
                  sspec, sspec],                              # alpha, bb (scalars)
        out_specs=vspec,
        # TODO(synk): at production scale add a row-tiled grid, set
        # compiler_params=pltpu.CompilerParams(dimension_semantics=("parallel",
        # ..., "arbitrary"), vmem_limit_bytes=...); unnecessary at N=8.
    )(x2, ops["adj"], ops["w0"], ops["b0"], ops["w1"], ops["b1"],
      ops["w2"], ops["b2"], ops["wbT"], ops["alpha"], ops["bb"])

    # logits = cat(sc_1, sc_2) along dim 0 -> shape [2N]
    return out.reshape(-1)


def dgi_reference(seq1, seq2, adj, params):
    """Plain f32 JAX reference (unfused, unpadded)."""
    alpha = params["alpha"][0, 0]

    def gcn(x):
        h = adj @ (x @ params["w0"]) + params["b0"]
        h = jnp.where(h >= 0, h, alpha * h)
        h = adj @ (h @ params["w1"]) + params["b1"]
        h = jnp.where(h >= 0, h, alpha * h)
        h = adj @ (h @ params["w2"]) + params["b2"]
        return h

    h1 = gcn(seq1)
    h2 = gcn(seq2)
    c = jax.nn.sigmoid(h1.mean(0))
    wc = params["wb"] @ c
    sc1 = h1 @ wc + params["bb"][0, 0]
    sc2 = h2 @ wc + params["bb"][0, 0]
    return jnp.concatenate([sc1, sc2], axis=0)


def build_normalized_adj(edge_index, num_nodes):
    A = jnp.zeros((num_nodes, num_nodes), jnp.float32)
    A = A.at[edge_index[0], edge_index[1]].set(1.0)
    A = A.at[edge_index[1], edge_index[0]].set(1.0)          # symmetrize
    A_hat = A + jnp.eye(num_nodes, dtype=jnp.float32)        # add self loops
    deg = A_hat.sum(axis=1)
    dinv = 1.0 / jnp.sqrt(deg)
    return dinv[:, None] * A_hat * dinv[None, :]


if __name__ == "__main__":
    N, n_in, n_h = 8, 32, 32

    key = jax.random.PRNGKey(0)
    k1, k2, k3, k4, k5, k6 = jax.random.split(key, 6)

    seq1 = jax.random.normal(k1, (N, n_in), jnp.float32)      # positive features
    seq2 = jax.random.normal(k2, (N, n_in), jnp.float32)      # corrupted features

    # deterministic ring graph edge_index [2, 2N]
    src = jnp.arange(N, dtype=jnp.int32)
    dst = (src + 1) % N
    edge_index = jnp.stack([jnp.concatenate([src, dst]),
                            jnp.concatenate([dst, src])], axis=0)
    adj = build_normalized_adj(edge_index, N)

    def glorot(k, shape):
        bound = jnp.sqrt(6.0 / (shape[0] + shape[1]))
        return jax.random.uniform(k, shape, jnp.float32, -bound, bound)

    params = {
        "w0": glorot(k3, (n_in, n_h)),
        "b0": jnp.zeros((1, n_h), jnp.float32),
        "w1": glorot(k4, (n_h, n_h)),
        "b1": jnp.zeros((1, n_h), jnp.float32),
        "w2": glorot(k5, (n_h, n_h)),
        "b2": jnp.zeros((1, n_h), jnp.float32),
        "alpha": jnp.full((1, 1), 0.25, jnp.float32),          # PReLU init
        "wb": glorot(k6, (n_h, n_h)),                          # bilinear weight (xavier)
        "bb": jnp.zeros((1, 1), jnp.float32),                  # bilinear bias -> 0
    }

    # Static per-model prep (casts / transpose) done exactly once.
    ops = prepare_dgi_operands(adj, params)

    logits = jax.block_until_ready(dgi_forward(seq1, seq2, ops))
    ref = jax.block_until_ready(dgi_reference(seq1, seq2, adj, params))

    assert logits.shape == (2 * N,)
    # bf16 MXU feeds / f32 accumulation inside the kernel -> relaxed tolerance
    # vs. the pure-f32 reference.
    assert jnp.allclose(logits, ref, rtol=5e-2, atol=5e-2), (
        "max abs diff = %s" % jnp.max(jnp.abs(logits - ref)))
    print("KERNEL_OK")
</pallas_src>

<mosaic_0001>
module attributes {stable_mosaic.version = 11 : i64} {
  func.func @dgi_kernel(%arg0: memref<16x32xbf16, #tpu.memory_space<vmem>>, %arg1: memref<8x8xbf16, #tpu.memory_space<vmem>>, %arg2: memref<32x32xbf16, #tpu.memory_space<vmem>>, %arg3: memref<1x32xf32, #tpu.memory_space<vmem>>, %arg4: memref<32x32xbf16, #tpu.memory_space<vmem>>, %arg5: memref<1x32xf32, #tpu.memory_space<vmem>>, %arg6: memref<32x32xbf16, #tpu.memory_space<vmem>>, %arg7: memref<1x32xf32, #tpu.memory_space<vmem>>, %arg8: memref<32x32xbf16, #tpu.memory_space<vmem>>, %arg9: memref<1x1xf32, #tpu.memory_space<smem>>, %arg10: memref<1x1xf32, #tpu.memory_space<smem>>, %arg11: memref<16x1xf32, #tpu.memory_space<vmem>>) attributes {dimension_semantics = [], scalar_prefetch = 0 : i64, scratch_operands = 0 : i64, tpu.core_type = #tpu.core_type<tc>} {
    %c0 = arith.constant 0 : index
    %c0_0 = arith.constant 0 : index
    %0 = memref.load %arg9[%c0, %c0_0] : memref<1x1xf32, #tpu.memory_space<smem>>
    %c0_1 = arith.constant 0 : index
    %c0_2 = arith.constant 0 : index
    %1 = vector.load %arg1[%c0_1, %c0_2] : memref<8x8xbf16, #tpu.memory_space<vmem>>, vector<8x8xbf16>
    %c0_3 = arith.constant 0 : index
    %c0_4 = arith.constant 0 : index
    %2 = vector.load %arg0[%c0_3, %c0_4] : memref<16x32xbf16, #tpu.memory_space<vmem>>, vector<16x32xbf16>
    %c0_5 = arith.constant 0 : index
    %c0_6 = arith.constant 0 : index
    %3 = vector.load %arg2[%c0_5, %c0_6] : memref<32x32xbf16, #tpu.memory_space<vmem>>, vector<32x32xbf16>
    %cst = arith.constant dense<0.000000e+00> : vector<16x32xf32>
    %4 = tpu.matmul %2, %3, %cst {dimension_numbers = #tpu.dot_dimension_numbers<[1], [0], [0], [1], [0, 0, 1, 1], [], []>} : vector<16x32xbf16>, vector<32x32xbf16>, vector<16x32xf32> -> vector<16x32xf32>
    %5 = vector.extract_strided_slice %4 {offsets = [0, 0], sizes = [8, 32], strides = [1, 1]} : vector<16x32xf32> to vector<8x32xf32>
    %6 = arith.truncf %5 : vector<8x32xf32> to vector<8x32xbf16>
    %cst_7 = arith.constant dense<0.000000e+00> : vector<8x32xf32>
    %7 = tpu.matmul %1, %6, %cst_7 {dimension_numbers = #tpu.dot_dimension_numbers<[1], [0], [0], [1], [0, 0, 1, 1], [], []>} : vector<8x8xbf16>, vector<8x32xbf16>, vector<8x32xf32> -> vector<8x32xf32>
    %8 = vector.extract_strided_slice %4 {offsets = [8, 0], sizes = [8, 32], strides = [1, 1]} : vector<16x32xf32> to vector<8x32xf32>
    %9 = arith.truncf %8 : vector<8x32xf32> to vector<8x32xbf16>
    %cst_8 = arith.constant dense<0.000000e+00> : vector<8x32xf32>
    %10 = tpu.matmul %1, %9, %cst_8 {dimension_numbers = #tpu.dot_dimension_numbers<[1], [0], [0], [1], [0, 0, 1, 1], [], []>} : vector<8x8xbf16>, vector<8x32xbf16>, vector<8x32xf32> -> vector<8x32xf32>
    %11 = tpu.concatenate %7, %10 in 0 : vector<8x32xf32>, vector<8x32xf32> -> vector<16x32xf32>
    %c0_9 = arith.constant 0 : index
    %c0_10 = arith.constant 0 : index
    %12 = vector.load %arg3[%c0_9, %c0_10] : memref<1x32xf32, #tpu.memory_space<vmem>>, vector<1x32xf32>
    %13 = vector.broadcast %12 : vector<1x32xf32> to vector<16x32xf32>
    %14 = arith.addf %11, %13 : vector<16x32xf32>
    %cst_11 = arith.constant 0.000000e+00 : f32
    %15 = vector.broadcast %cst_11 : f32 to vector<16x32xf32>
    %16 = arith.cmpf oge, %14, %15 : vector<16x32xf32>
    %17 = vector.broadcast %0 : f32 to vector<16x32xf32>
    %18 = arith.mulf %17, %14 : vector<16x32xf32>
    %19 = arith.select %16, %14, %18 : vector<16x32xi1>, vector<16x32xf32>
    %20 = arith.truncf %19 : vector<16x32xf32> to vector<16x32xbf16>
    %c0_12 = arith.constant 0 : index
    %c0_13 = arith.constant 0 : index
    %21 = vector.load %arg4[%c0_12, %c0_13] : memref<32x32xbf16, #tpu.memory_space<vmem>>, vector<32x32xbf16>
    %cst_14 = arith.constant dense<0.000000e+00> : vector<16x32xf32>
    %22 = tpu.matmul %20, %21, %cst_14 {dimension_numbers = #tpu.dot_dimension_numbers<[1], [0], [0], [1], [0, 0, 1, 1], [], []>} : vector<16x32xbf16>, vector<32x32xbf16>, vector<16x32xf32> -> vector<16x32xf32>
    %23 = vector.extract_strided_slice %22 {offsets = [0, 0], sizes = [8, 32], strides = [1, 1]} : vector<16x32xf32> to vector<8x32xf32>
    %24 = arith.truncf %23 : vector<8x32xf32> to vector<8x32xbf16>
    %cst_15 = arith.constant dense<0.000000e+00> : vector<8x32xf32>
    %25 = tpu.matmul %1, %24, %cst_15 {dimension_numbers = #tpu.dot_dimension_numbers<[1], [0], [0], [1], [0, 0, 1, 1], [], []>} : vector<8x8xbf16>, vector<8x32xbf16>, vector<8x32xf32> -> vector<8x32xf32>
    %26 = vector.extract_strided_slice %22 {offsets = [8, 0], sizes = [8, 32], strides = [1, 1]} : vector<16x32xf32> to vector<8x32xf32>
    %27 = arith.truncf %26 : vector<8x32xf32> to vector<8x32xbf16>
    %cst_16 = arith.constant dense<0.000000e+00> : vector<8x32xf32>
    %28 = tpu.matmul %1, %27, %cst_16 {dimension_numbers = #tpu.dot_dimension_numbers<[1], [0], [0], [1], [0, 0, 1, 1], [], []>} : vector<8x8xbf16>, vector<8x32xbf16>, vector<8x32xf32> -> vector<8x32xf32>
    %29 = tpu.concatenate %25, %28 in 0 : vector<8x32xf32>, vector<8x32xf32> -> vector<16x32xf32>
    %c0_17 = arith.constant 0 : index
    %c0_18 = arith.constant 0 : index
    %30 = vector.load %arg5[%c0_17, %c0_18] : memref<1x32xf32, #tpu.memory_space<vmem>>, vector<1x32xf32>
    %31 = vector.broadcast %30 : vector<1x32xf32> to vector<16x32xf32>
    %32 = arith.addf %29, %31 : vector<16x32xf32>
    %cst_19 = arith.constant 0.000000e+00 : f32
    %33 = vector.broadcast %cst_19 : f32 to vector<16x32xf32>
    %34 = arith.cmpf oge, %32, %33 : vector<16x32xf32>
    %35 = vector.broadcast %0 : f32 to vector<16x32xf32>
    %36 = arith.mulf %35, %32 : vector<16x32xf32>
    %37 = arith.select %34, %32, %36 : vector<16x32xi1>, vector<16x32xf32>
    %38 = arith.truncf %37 : vector<16x32xf32> to vector<16x32xbf16>
    %c0_20 = arith.constant 0 : index
    %c0_21 = arith.constant 0 : index
    %39 = vector.load %arg6[%c0_20, %c0_21] : memref<32x32xbf16, #tpu.memory_space<vmem>>, vector<32x32xbf16>
    %cst_22 = arith.constant dense<0.000000e+00> : vector<16x32xf32>
    %40 = tpu.matmul %38, %39, %cst_22 {dimension_numbers = #tpu.dot_dimension_numbers<[1], [0], [0], [1], [0, 0, 1, 1], [], []>} : vector<16x32xbf16>, vector<32x32xbf16>, vector<16x32xf32> -> vector<16x32xf32>
    %41 = vector.extract_strided_slice %40 {offsets = [0, 0], sizes = [8, 32], strides = [1, 1]} : vector<16x32xf32> to vector<8x32xf32>
    %42 = arith.truncf %41 : vector<8x32xf32> to vector<8x32xbf16>
    %cst_23 = arith.constant dense<0.000000e+00> : vector<8x32xf32>
    %43 = tpu.matmul %1, %42, %cst_23 {dimension_numbers = #tpu.dot_dimension_numbers<[1], [0], [0], [1], [0, 0, 1, 1], [], []>} : vector<8x8xbf16>, vector<8x32xbf16>, vector<8x32xf32> -> vector<8x32xf32>
    %44 = vector.extract_strided_slice %40 {offsets = [8, 0], sizes = [8, 32], strides = [1, 1]} : vector<16x32xf32> to vector<8x32xf32>
    %45 = arith.truncf %44 : vector<8x32xf32> to vector<8x32xbf16>
    %cst_24 = arith.constant dense<0.000000e+00> : vector<8x32xf32>
    %46 = tpu.matmul %1, %45, %cst_24 {dimension_numbers = #tpu.dot_dimension_numbers<[1], [0], [0], [1], [0, 0, 1, 1], [], []>} : vector<8x8xbf16>, vector<8x32xbf16>, vector<8x32xf32> -> vector<8x32xf32>
    %47 = tpu.concatenate %43, %46 in 0 : vector<8x32xf32>, vector<8x32xf32> -> vector<16x32xf32>
    %c0_25 = arith.constant 0 : index
    %c0_26 = arith.constant 0 : index
    %48 = vector.load %arg7[%c0_25, %c0_26] : memref<1x32xf32, #tpu.memory_space<vmem>>, vector<1x32xf32>
    %49 = vector.broadcast %48 : vector<1x32xf32> to vector<16x32xf32>
    %50 = arith.addf %47, %49 : vector<16x32xf32>
    %51 = vector.extract_strided_slice %50 {offsets = [0, 0], sizes = [8, 32], strides = [1, 1]} : vector<16x32xf32> to vector<8x32xf32>
    %cst_27 = arith.constant dense<0.000000e+00> : vector<32xf32>
    %52 = vector.multi_reduction <add>, %51, %cst_27 [0] : vector<8x32xf32> to vector<32xf32>
    %53 = vector.shape_cast %52 : vector<32xf32> to vector<1x32xf32>
    %cst_28 = arith.constant 8.000000e+00 : f32
    %54 = vector.broadcast %cst_28 : f32 to vector<1x32xf32>
    %55 = arith.divf %53, %54 : vector<1x32xf32>
    %cst_29 = arith.constant 0.000000e+00 : f32
    %56 = vector.broadcast %cst_29 : f32 to vector<1x32xf32>
    %57 = arith.subf %56, %55 : vector<1x32xf32>
    %58 = math.exp %57 : vector<1x32xf32>
    %cst_30 = arith.constant 1.000000e+00 : f32
    %59 = vector.broadcast %cst_30 : f32 to vector<1x32xf32>
    %60 = arith.addf %59, %58 : vector<1x32xf32>
    %cst_31 = arith.constant 1.000000e+00 : f32
    %61 = vector.broadcast %cst_31 : f32 to vector<1x32xf32>
    %62 = arith.divf %61, %60 : vector<1x32xf32>
    %63 = arith.truncf %62 : vector<1x32xf32> to vector<1x32xbf16>
    %c0_32 = arith.constant 0 : index
    %c0_33 = arith.constant 0 : index
    %64 = vector.load %arg8[%c0_32, %c0_33] : memref<32x32xbf16, #tpu.memory_space<vmem>>, vector<32x32xbf16>
    %cst_34 = arith.constant dense<0.000000e+00> : vector<1x32xf32>
    %65 = tpu.matmul %63, %64, %cst_34 {dimension_numbers = #tpu.dot_dimension_numbers<[1], [0], [0], [1], [0, 0, 1, 1], [], []>} : vector<1x32xbf16>, vector<32x32xbf16>, vector<1x32xf32> -> vector<1x32xf32>
    %66 = vector.broadcast %65 : vector<1x32xf32> to vector<16x32xf32>
    %67 = arith.mulf %50, %66 : vector<16x32xf32>
    %cst_35 = arith.constant dense<0.000000e+00> : vector<16xf32>
    %68 = vector.multi_reduction <add>, %67, %cst_35 [1] : vector<16x32xf32> to vector<16xf32>
    %69 = vector.shape_cast %68 : vector<16xf32> to vector<16x1xf32>
    %c0_36 = arith.constant 0 : index
    %c0_37 = arith.constant 0 : index
    %70 = memref.load %arg10[%c0_36, %c0_37] : memref<1x1xf32, #tpu.memory_space<smem>>
    %71 = vector.broadcast %70 : f32 to vector<16x1xf32>
    %72 = arith.addf %69, %71 : vector<16x1xf32>
    %c0_38 = arith.constant 0 : index
    %c0_39 = arith.constant 0 : index
    %73 = vector.load %arg11[%c0_38, %c0_39] : memref<16x1xf32, #tpu.memory_space<vmem>>, vector<16x1xf32>
    tpu.vector_store %arg11[%c0_38, %c0_39], %72 {strides = array<i32>} : memref<16x1xf32, #tpu.memory_space<vmem>>, vector<16x1xf32>,
    return
  }
}

</mosaic_0001>

<llo_original>
// kernel: dgi_forward.1
$region0: #{dgi_forward.1}
  #allocation0 [shape = 'u32[]', space=smem, size = 0x4, offset = 0x4, fixed_abs, tag = 'smem constant byte address 0x4 - core index']
  #allocation1 [shape = 'u32[144,128]{1,0:T(1,128)}', space=vmem, size = 0x12000, scoped, tag = 'internal scratch']
  #allocation2 [shape = 'f32[1,1]{1,0:T(1,128)S(6)}', space=smem, size = 0x200, scoped, tag = 'scoped memory for dgi_forward.1']
  #allocation3 [shape = 'f32[1,1]{1,0:T(1,128)S(6)}', space=smem, size = 0x200, scoped, tag = 'scoped memory for dgi_forward.1']
  %s0 = inlined_call_operand.vmem [shape: bf16[16,32], index: 0, kind: input, shape index: {}]
  %s1 = inlined_call_operand.hbm [shape: bf16[8,8], index: 1, kind: input, shape index: {}]
  %s2 = inlined_call_operand.vmem [shape: bf16[32,32], index: 2, kind: input, shape index: {}]
  %s3 = inlined_call_operand.vmem [shape: f32[1,32], index: 3, kind: input, shape index: {}]
  %s4 = inlined_call_operand.vmem [shape: bf16[32,32], index: 4, kind: input, shape index: {}]
  %s5 = inlined_call_operand.vmem [shape: f32[1,32], index: 5, kind: input, shape index: {}]
  %s6 = inlined_call_operand.vmem [shape: bf16[32,32], index: 6, kind: input, shape index: {}]
  %s7 = inlined_call_operand.hbm [shape: f32[1,32], index: 7, kind: input, shape index: {}]
  %s8 = inlined_call_operand.vmem [shape: bf16[32,32], index: 8, kind: input, shape index: {}]
  %s9 = inlined_call_operand.<no memory space> [shape: f32[1,1], index: 9, kind: input, shape index: {}]
  %s10 = inlined_call_operand.<no memory space> [shape: f32[1,1], index: 10, kind: input, shape index: {}]
  %s11 = inlined_call_operand.vmem [shape: f32[16,1], index: 11, kind: output, shape index: {}]
  %s12 = sld [smem:[#allocation0]]
  $region62: #{dgi_forward.1} parent=0
    _
  %s14 = ssub.s32 1, %s12
  %s15 = scalar_select 0, %s14, %s12
  %16 = sst [smem:[#allocation2]] %s9
  %17 = sst [smem:[#allocation3]] %s10
  $region1: #{dgi_forward.1} parent=0
    #allocation4 [shape = 'u8[2048]{0}', space=vmem, size = 0x800, scoped, tag = 'input window, operand 1, single buffered']
    #allocation5 [shape = 's32[1]{0}', space=sflag, size = 0x4, scoped, tag = 'scoped memory for dgi_forward.1']
    #allocation6 [shape = 'u8[512]{0}', space=vmem, size = 0x400, scoped, tag = 'input window, operand 7, single buffered']
    #allocation7 [shape = 's32[1]{0}', space=sflag, size = 0x4, scoped, tag = 'scoped memory for dgi_forward.1']
    %18 = vsyncpa [#allocation5], 0
    %19 = vsyncpa [#allocation7], 0
    // Predicated region
    $region2: #{dgi_forward.1} parent=1 // pred_check
      _
    $region3: #{dgi_forward.1} parent=1 // pred_check_branch
      %21 = sbr.rel (0) target = $region5
    $region4: #{dgi_forward.1} parent=1 // pred_region
      _
    $region5: #{dgi_forward.1} parent=1 // pred_fallthru
      _
    // Predicated region
    $region6: #{dgi_forward.1} parent=1 // pred_check
      _
    $region7: #{dgi_forward.1} parent=1 // pred_check_branch
      %23 = sbr.rel (0) target = $region9
    $region8: #{dgi_forward.1} parent=1 // pred_region
      %s25 = ssub.s32 64, 64
      %26 = vsyncadd [#allocation5], %s25
      %s28 = sshll.u32 [#allocation4], 4
      %s29 = int_to_ptr.vmem [resolvable:$true] %s28
      %31 = dma.hbm_to_vmem [thread:$0]  %s1, 64, %s29, [#allocation5]
    $region9: #{dgi_forward.1} parent=1 // pred_fallthru
      _
    // Predicated region
    $region10: #{dgi_forward.1} parent=1 // pred_check
      _
    $region11: #{dgi_forward.1} parent=1 // pred_check_branch
      %33 = sbr.rel (0) target = $region13
    $region12: #{dgi_forward.1} parent=1 // pred_region
      _
    $region13: #{dgi_forward.1} parent=1 // pred_fallthru
      _
    // Predicated region
    $region14: #{dgi_forward.1} parent=1 // pred_check
      _
    $region15: #{dgi_forward.1} parent=1 // pred_check_branch
      %35 = sbr.rel (0) target = $region17
    $region16: #{dgi_forward.1} parent=1 // pred_region
      _
    $region17: #{dgi_forward.1} parent=1 // pred_fallthru
      _
    // Predicated region
    $region18: #{dgi_forward.1} parent=1 // pred_check
      _
    $region19: #{dgi_forward.1} parent=1 // pred_check_branch
      %37 = sbr.rel (0) target = $region21
    $region20: #{dgi_forward.1} parent=1 // pred_region
      _
    $region21: #{dgi_forward.1} parent=1 // pred_fallthru
      _
    // Predicated region
    $region22: #{dgi_forward.1} parent=1 // pred_check
      _
    $region23: #{dgi_forward.1} parent=1 // pred_check_branch
      %39 = sbr.rel (0) target = $region25
    $region24: #{dgi_forward.1} parent=1 // pred_region
      _
    $region25: #{dgi_forward.1} parent=1 // pred_fallthru
      _
    // Predicated region
    $region26: #{dgi_forward.1} parent=1 // pred_check
      _
    $region27: #{dgi_forward.1} parent=1 // pred_check_branch
      %41 = sbr.rel (0) target = $region29
    $region28: #{dgi_forward.1} parent=1 // pred_region
      _
    $region29: #{dgi_forward.1} parent=1 // pred_fallthru
      _
    // Predicated region
    $region30: #{dgi_forward.1} parent=1 // pred_check
      _
    $region31: #{dgi_forward.1} parent=1 // pred_check_branch
      %43 = sbr.rel (0) target = $region33
    $region32: #{dgi_forward.1} parent=1 // pred_region
      %s45 = ssub.s32 16, 16
      %46 = vsyncadd [#allocation7], %s45
      %s48 = sshll.u32 [#allocation6], 4
      %s49 = int_to_ptr.vmem [resolvable:$true] %s48
      %51 = dma.hbm_to_vmem [thread:$0]  %s7, 16, %s49, [#allocation7]
    $region33: #{dgi_forward.1} parent=1 // pred_fallthru
      _
    // Predicated region
    $region34: #{dgi_forward.1} parent=1 // pred_check
      _
    $region35: #{dgi_forward.1} parent=1 // pred_check_branch
      %53 = sbr.rel (0) target = $region37
    $region36: #{dgi_forward.1} parent=1 // pred_region
      _
    $region37: #{dgi_forward.1} parent=1 // pred_fallthru
      _
    // Predicated region
    $region38: #{dgi_forward.1} parent=1 // pred_check
      _
    $region39: #{dgi_forward.1} parent=1 // pred_check_branch
      %55 = sbr.rel (0) target = $region41
    $region40: #{dgi_forward.1} parent=1 // pred_region
      _
    $region41: #{dgi_forward.1} parent=1 // pred_fallthru
      _
    // Predicated region
    $region42: #{dgi_forward.1} parent=1 // pred_check
      _
    $region43: #{dgi_forward.1} parent=1 // pred_check_branch
      %57 = sbr.rel (0) target = $region45
    $region44: #{dgi_forward.1} parent=1 // pred_region
      _
    $region45: #{dgi_forward.1} parent=1 // pred_fallthru
      _
    // Predicated region
    $region46: #{dgi_forward.1} parent=1 // pred_check
      _
    $region47: #{dgi_forward.1} parent=1 // pred_check_branch
      %59 = sbr.rel (0) target = $region49
    $region48: #{dgi_forward.1} parent=1 // pred_region
      %60 = dma.done [#allocation5], 64
    $region49: #{dgi_forward.1} parent=1 // pred_fallthru
      _
    // Predicated region
    $region50: #{dgi_forward.1} parent=1 // pred_check
      _
    $region51: #{dgi_forward.1} parent=1 // pred_check_branch
      %62 = sbr.rel (0) target = $region53
    $region52: #{dgi_forward.1} parent=1 // pred_region
      %63 = dma.done [#allocation7], 16
    $region53: #{dgi_forward.1} parent=1 // pred_fallthru
      _
    %s65 = sld [smem:[#allocation2]]
    %v66 = vld [vmem:[#allocation4] sm:$0xf]
    %v67 = vld [vmem:[%s0] sm:$0xf]
    %v68 = vld [vmem:[%s0 + $0x4] sm:$0xf]
    %v69 = vld [vmem:[%s2] sm:$0xf]
    %v70 = vld [vmem:[%s2 + $0x4] sm:$0xf]
    %v71 = vld [vmem:[%s2 + $0x8] sm:$0xf]
    %v72 = vld [vmem:[%s2 + $0xc] sm:$0xf]
    %v75 = vunpack.c.l.b16 %v67
    %v76 = vunpack.c.l.b16 %v68
    %v77 = vpack.c.b16 %v76, %v75
    %v82 = vunpack.c.l.b16 %v69
    %v83 = vunpack.c.l.b16 %v70
    %v84 = vunpack.c.l.b16 %v71
    %v85 = vunpack.c.l.b16 %v72
    %v86 = vpack.c.b16 %v83, %v82
    %v87 = vpack.c.b16 %v85, %v84
    %vm90 = vcmask 261120
    %v92 = vsel %vm90, %v77, 0
    %94 = vmatprep.subr.bf16.mxu0 0
    %95 = vmatpush1.bf16.msra.mxu0 %v86
    %96 = vmatprep.subr.bf16.mxu0 0
    %97 = vmatpush1.bf16.msra.mxu0 %v87
    %98 = vmatprep.subr.bf16.mxu0 0
    %99 = vmatpush1.bf16.msra.mxu0 0
    %100 = vmatprep.subr.bf16.mxu0 0
    %101 = vmatpush1.bf16.msra.mxu0 0
    %102 = vmatprep.subr.bf16.mxu0 0
    %103 = vmatpush1.bf16.msra.mxu0 0
    %104 = vmatprep.subr.bf16.mxu0 0
    %105 = vmatpush1.bf16.msra.mxu0 0
    %106 = vmatprep.subr.bf16.mxu0 0
    %107 = vmatpush1.bf16.msra.mxu0 0
    %108 = vmatprep.subr.bf16.mxu0 0
    %109 = vmatpush1.bf16.msra.mxu0 0
    %110 = vmatprep.subr.bf16.mxu0 0
    %111 = vmatpush1.bf16.msra.mxu0 0
    %112 = vmatprep.subr.bf16.mxu0 0
    %113 = vmatpush1.bf16.msra.mxu0 0
    %114 = vmatprep.subr.bf16.mxu0 0
    %115 = vmatpush1.bf16.msra.mxu0 0
    %116 = vmatprep.subr.bf16.mxu0 0
    %117 = vmatpush1.bf16.msra.mxu0 0
    %118 = vmatprep.subr.bf16.mxu0 0
    %119 = vmatpush1.bf16.msra.mxu0 0
    %120 = vmatprep.subr.bf16.mxu0 0
    %121 = vmatpush1.bf16.msra.mxu0 0
    %122 = vmatprep.subr.bf16.mxu0 0
    %123 = vmatpush1.bf16.msra.mxu0 0
    %124 = vmatprep.subr.bf16.mxu0 0
    %125 = vmatpush1.bf16.msra.mxu0 0
    %126 = vmatprep.mubr.bf16.mxu0 0
    %127 = vmatmul.mubr.bf16.gmra.mrb[0].mxu0 %v92
    %v128 = vpop.f32.mrb[0].mxu0
    %v129 = vadd.f32 0.0, %v128
    %v130 = vpop.f32.mrb[0].mxu0
    %v131 = vpop.f32.mrb[0].mxu0
    %v132 = vadd.f32 0.0, %v131
    %v133 = vpop.f32.mrb[0].mxu0
    %134 = vdwg.mxu0
    %v135 = vpack.c.bf16 %v129, %v129
    %vm136 = vcmask 64512
    %v138 = vsel %vm136, %v66, 0
    %vm140 = vcmask 1043456
    %v142 = vsel %vm140, %v135, 0
    %144 = vmatprep.subr.bf16.mxu0 0
    %145 = vmatpush1.bf16.msra.mxu0 %v142
    %146 = vmatprep.subr.bf16.mxu0 0
    %147 = vmatpush1.bf16.msra.mxu0 0
    %148 = vmatprep.subr.bf16.mxu0 0
    %149 = vmatpush1.bf16.msra.mxu0 0
    %150 = vmatprep.subr.bf16.mxu0 0
    %151 = vmatpush1.bf16.msra.mxu0 0
    %152 = vmatprep.subr.bf16.mxu0 0
    %153 = vmatpush1.bf16.msra.mxu0 0
    %154 = vmatprep.subr.bf16.mxu0 0
    %155 = vmatpush1.bf16.msra.mxu0 0
    %156 = vmatprep.subr.bf16.mxu0 0
    %157 = vmatpush1.bf16.msra.mxu0 0
    %158 = vmatprep.subr.bf16.mxu0 0
    %159 = vmatpush1.bf16.msra.mxu0 0
    %160 = vmatprep.subr.bf16.mxu0 0
    %161 = vmatpush1.bf16.msra.mxu0 0
    %162 = vmatprep.subr.bf16.mxu0 0
    %163 = vmatpush1.bf16.msra.mxu0 0
    %164 = vmatprep.subr.bf16.mxu0 0
    %165 = vmatpush1.bf16.msra.mxu0 0
    %166 = vmatprep.subr.bf16.mxu0 0
    %167 = vmatpush1.bf16.msra.mxu0 0
    %168 = vmatprep.subr.bf16.mxu0 0
    %169 = vmatpush1.bf16.msra.mxu0 0
    %170 = vmatprep.subr.bf16.mxu0 0
    %171 = vmatpush1.bf16.msra.mxu0 0
    %172 = vmatprep.subr.bf16.mxu0 0
    %173 = vmatpush1.bf16.msra.mxu0 0
    %174 = vmatprep.subr.bf16.mxu0 0
    %175 = vmatpush1.bf16.msra.mxu0 0
    %176 = vmatprep.mubr.bf16.mxu0 0
    %177 = vmatmul.mubr.bf16.gmra.mrb[0].mxu0 %v138
    %v178 = vpop.f32.mrb[0].mxu0
    %v179 = vadd.f32 0.0, %v178
    %v180 = vpop.f32.mrb[0].mxu0
    %v181 = vpop.f32.mrb[0].mxu0
    %v182 = vpop.f32.mrb[0].mxu0
    %183 = vdwg.mxu0
    %v184 = vpack.c.bf16 %v132, %v132
    %v186 = vsel %vm140, %v184, 0
    %188 = vmatprep.subr.bf16.mxu0 0
    %189 = vmatpush1.bf16.msra.mxu0 %v186
    %190 = vmatprep.subr.bf16.mxu0 0
    %191 = vmatpush1.bf16.msra.mxu0 0
    %192 = vmatprep.subr.bf16.mxu0 0
    %193 = vmatpush1.bf16.msra.mxu0 0
    %194 = vmatprep.subr.bf16.mxu0 0
    %195 = vmatpush1.bf16.msra.mxu0 0
    %196 = vmatprep.subr.bf16.mxu0 0
    %197 = vmatpush1.bf16.msra.mxu0 0
    %198 = vmatprep.subr.bf16.mxu0 0
    %199 = vmatpush1.bf16.msra.mxu0 0
    %200 = vmatprep.subr.bf16.mxu0 0
    %201 = vmatpush1.bf16.msra.mxu0 0
    %202 = vmatprep.subr.bf16.mxu0 0
    %203 = vmatpush1.bf16.msra.mxu0 0
    %204 = vmatprep.subr.bf16.mxu0 0
    %205 = vmatpush1.bf16.msra.mxu0 0
    %206 = vmatprep.subr.bf16.mxu0 0
    %207 = vmatpush1.bf16.msra.mxu0 0
    %208 = vmatprep.subr.bf16.mxu0 0
    %209 = vmatpush1.bf16.msra.mxu0 0
    %210 = vmatprep.subr.bf16.mxu0 0
    %211 = vmatpush1.bf16.msra.mxu0 0
    %212 = vmatprep.subr.bf16.mxu0 0
    %213 = vmatpush1.bf16.msra.mxu0 0
    %214 = vmatprep.subr.bf16.mxu0 0
    %215 = vmatpush1.bf16.msra.mxu0 0
    %216 = vmatprep.subr.bf16.mxu0 0
    %217 = vmatpush1.bf16.msra.mxu0 0
    %218 = vmatprep.subr.bf16.mxu0 0
    %219 = vmatpush1.bf16.msra.mxu0 0
    %220 = vmatprep.mubr.bf16.mxu0 0
    %221 = vmatmul.mubr.bf16.gmra.mrb[0].mxu0 %v138
    %v222 = vpop.f32.mrb[0].mxu0
    %v223 = vadd.f32 0.0, %v222
    %v224 = vpop.f32.mrb[0].mxu0
    %v225 = vpop.f32.mrb[0].mxu0
    %v226 = vpop.f32.mrb[0].mxu0
    %227 = vdwg.mxu0
    %v228 = vld [vmem:[%s3] sm:$0x1]
    %v230 = vlaneseq
    %v231 = vshrl.u32 %v230, 7
    %v232 = vsub.s32 0, %v231
    %v233 = vrot.slane %v228, %v232
    %v235 = vadd.f32 %v179, %v233
    %v236 = vadd.f32 %v223, %v233
    %vm237 = vcmp.ge.f32.partialorder %v235, 0.0
    %vm238 = vcmp.ge.f32.partialorder %v236, 0.0
    %v239 = vstv %s65
    %v240 = vmul.f32 %v239, %v235
    %v241 = vmul.f32 %v239, %v236
    %v242 = vsel %vm237, %v235, %v240
    %v243 = vsel %vm238, %v236, %v241
    %v244 = vpack.c.bf16 %v243, %v242
    %v245 = vld [vmem:[%s4] sm:$0xf]
    %v246 = vld [vmem:[%s4 + $0x4] sm:$0xf]
    %v247 = vld [vmem:[%s4 + $0x8] sm:$0xf]
    %v248 = vld [vmem:[%s4 + $0xc] sm:$0xf]
    %v253 = vunpack.c.l.b16 %v245
    %v254 = vunpack.c.l.b16 %v246
    %v255 = vunpack.c.l.b16 %v247
    %v256 = vunpack.c.l.b16 %v248
    %v257 = vpack.c.b16 %v254, %v253
    %v258 = vpack.c.b16 %v256, %v255
    %v262 = vsel %vm90, %v244, 0
    %264 = vmatprep.subr.bf16.mxu0 0
    %265 = vmatpush1.bf16.msra.mxu0 %v257
    %266 = vmatprep.subr.bf16.mxu0 0
    %267 = vmatpush1.bf16.msra.mxu0 %v258
    %268 = vmatprep.subr.bf16.mxu0 0
    %269 = vmatpush1.bf16.msra.mxu0 0
    %270 = vmatprep.subr.bf16.mxu0 0
    %271 = vmatpush1.bf16.msra.mxu0 0
    %272 = vmatprep.subr.bf16.mxu0 0
    %273 = vmatpush1.bf16.msra.mxu0 0
    %274 = vmatprep.subr.bf16.mxu0 0
    %275 = vmatpush1.bf16.msra.mxu0 0
    %276 = vmatprep.subr.bf16.mxu0 0
    %277 = vmatpush1.bf16.msra.mxu0 0
    %278 = vmatprep.subr.bf16.mxu0 0
    %279 = vmatpush1.bf16.msra.mxu0 0
    %280 = vmatprep.subr.bf16.mxu0 0
    %281 = vmatpush1.bf16.msra.mxu0 0
    %282 = vmatprep.subr.bf16.mxu0 0
    %283 = vmatpush1.bf16.msra.mxu0 0
    %284 = vmatprep.subr.bf16.mxu0 0
    %285 = vmatpush1.bf16.msra.mxu0 0
    %286 = vmatprep.subr.bf16.mxu0 0
    %287 = vmatpush1.bf16.msra.mxu0 0
    %288 = vmatprep.subr.bf16.mxu0 0
    %289 = vmatpush1.bf16.msra.mxu0 0
    %290 = vmatprep.subr.bf16.mxu0 0
    %291 = vmatpush1.bf16.msra.mxu0 0
    %292 = vmatprep.subr.bf16.mxu0 0
    %293 = vmatpush1.bf16.msra.mxu0 0
    %294 = vmatprep.subr.bf16.mxu0 0
    %295 = vmatpush1.bf16.msra.mxu0 0
    %296 = vmatprep.mubr.bf16.mxu0 0
    %297 = vmatmul.mubr.bf16.gmra.mrb[0].mxu0 %v262
    %v298 = vpop.f32.mrb[0].mxu0
    %v299 = vadd.f32 0.0, %v298
    %v300 = vpop.f32.mrb[0].mxu0
    %v301 = vpop.f32.mrb[0].mxu0
    %v302 = vadd.f32 0.0, %v301
    %v303 = vpop.f32.mrb[0].mxu0
    %304 = vdwg.mxu0
    %v305 = vpack.c.bf16 %v299, %v299
    %v307 = vsel %vm140, %v305, 0
    %309 = vmatprep.subr.bf16.mxu0 0
    %310 = vmatpush1.bf16.msra.mxu0 %v307
    %311 = vmatprep.subr.bf16.mxu0 0
    %312 = vmatpush1.bf16.msra.mxu0 0
    %313 = vmatprep.subr.bf16.mxu0 0
    %314 = vmatpush1.bf16.msra.mxu0 0
    %315 = vmatprep.subr.bf16.mxu0 0
    %316 = vmatpush1.bf16.msra.mxu0 0
    %317 = vmatprep.subr.bf16.mxu0 0
    %318 = vmatpush1.bf16.msra.mxu0 0
    %319 = vmatprep.subr.bf16.mxu0 0
    %320 = vmatpush1.bf16.msra.mxu0 0
    %321 = vmatprep.subr.bf16.mxu0 0
    %322 = vmatpush1.bf16.msra.mxu0 0
    %323 = vmatprep.subr.bf16.mxu0 0
    %324 = vmatpush1.bf16.msra.mxu0 0
    %325 = vmatprep.subr.bf16.mxu0 0
    %326 = vmatpush1.bf16.msra.mxu0 0
    %327 = vmatprep.subr.bf16.mxu0 0
    %328 = vmatpush1.bf16.msra.mxu0 0
    %329 = vmatprep.subr.bf16.mxu0 0
    %330 = vmatpush1.bf16.msra.mxu0 0
    %331 = vmatprep.subr.bf16.mxu0 0
    %332 = vmatpush1.bf16.msra.mxu0 0
    %333 = vmatprep.subr.bf16.mxu0 0
    %334 = vmatpush1.bf16.msra.mxu0 0
    %335 = vmatprep.subr.bf16.mxu0 0
    %336 = vmatpush1.bf16.msra.mxu0 0
    %337 = vmatprep.subr.bf16.mxu0 0
    %338 = vmatpush1.bf16.msra.mxu0 0
    %339 = vmatprep.subr.bf16.mxu0 0
    %340 = vmatpush1.bf16.msra.mxu0 0
    %341 = vmatprep.mubr.bf16.mxu0 0
    %342 = vmatmul.mubr.bf16.gmra.mrb[0].mxu0 %v138
    %v343 = vpop.f32.mrb[0].mxu0
    %v344 = vadd.f32 0.0, %v343
    %v345 = vpop.f32.mrb[0].mxu0
    %v346 = vpop.f32.mrb[0].mxu0
    %v347 = vpop.f32.mrb[0].mxu0
    %348 = vdwg.mxu0
    %v349 = vpack.c.bf16 %v302, %v302
    %v351 = vsel %vm140, %v349, 0
    %353 = vmatprep.subr.bf16.mxu0 0
    %354 = vmatpush1.bf16.msra.mxu0 %v351
    %355 = vmatprep.subr.bf16.mxu0 0
    %356 = vmatpush1.bf16.msra.mxu0 0
    %357 = vmatprep.subr.bf16.mxu0 0
    %358 = vmatpush1.bf16.msra.mxu0 0
    %359 = vmatprep.subr.bf16.mxu0 0
    %360 = vmatpush1.bf16.msra.mxu0 0
    %361 = vmatprep.subr.bf16.mxu0 0
    %362 = vmatpush1.bf16.msra.mxu0 0
    %363 = vmatprep.subr.bf16.mxu0 0
    %364 = vmatpush1.bf16.msra.mxu0 0
    %365 = vmatprep.subr.bf16.mxu0 0
    %366 = vmatpush1.bf16.msra.mxu0 0
    %367 = vmatprep.subr.bf16.mxu0 0
    %368 = vmatpush1.bf16.msra.mxu0 0
    %369 = vmatprep.subr.bf16.mxu0 0
    %370 = vmatpush1.bf16.msra.mxu0 0
    %371 = vmatprep.subr.bf16.mxu0 0
    %372 = vmatpush1.bf16.msra.mxu0 0
    %373 = vmatprep.subr.bf16.mxu0 0
    %374 = vmatpush1.bf16.msra.mxu0 0
    %375 = vmatprep.subr.bf16.mxu0 0
    %376 = vmatpush1.bf16.msra.mxu0 0
    %377 = vmatprep.subr.bf16.mxu0 0
    %378 = vmatpush1.bf16.msra.mxu0 0
    %379 = vmatprep.subr.bf16.mxu0 0
    %380 = vmatpush1.bf16.msra.mxu0 0
    %381 = vmatprep.subr.bf16.mxu0 0
    %382 = vmatpush1.bf16.msra.mxu0 0
    %383 = vmatprep.subr.bf16.mxu0 0
    %384 = vmatpush1.bf16.msra.mxu0 0
    %385 = vmatprep.mubr.bf16.mxu0 0
    %386 = vmatmul.mubr.bf16.gmra.mrb[0].mxu0 %v138
    %v387 = vpop.f32.mrb[0].mxu0
    %v388 = vadd.f32 0.0, %v387
    %v389 = vpop.f32.mrb[0].mxu0
    %v390 = vpop.f32.mrb[0].mxu0
    %v391 = vpop.f32.mrb[0].mxu0
    %392 = vdwg.mxu0
    %v393 = vld [vmem:[%s5] sm:$0x1]
    %v395 = vlaneseq
    %v396 = vshrl.u32 %v395, 7
    %v397 = vsub.s32 0, %v396
    %v398 = vrot.slane %v393, %v397
    %v400 = vadd.f32 %v344, %v398
    %v401 = vadd.f32 %v388, %v398
    %vm402 = vcmp.ge.f32.partialorder %v400, 0.0
    %vm403 = vcmp.ge.f32.partialorder %v401, 0.0
    %v404 = vmul.f32 %v239, %v400
    %v405 = vmul.f32 %v239, %v401
    %v406 = vsel %vm402, %v400, %v404
    %v407 = vsel %vm403, %v401, %v405
    %v408 = vpack.c.bf16 %v407, %v406
    %v409 = vld [vmem:[%s6] sm:$0xf]
    %v410 = vld [vmem:[%s6 + $0x4] sm:$0xf]
    %v411 = vld [vmem:[%s6 + $0x8] sm:$0xf]
    %v412 = vld [vmem:[%s6 + $0xc] sm:$0xf]
    %v417 = vunpack.c.l.b16 %v409
    %v418 = vunpack.c.l.b16 %v410
    %v419 = vunpack.c.l.b16 %v411
    %v420 = vunpack.c.l.b16 %v412
    %v421 = vpack.c.b16 %v418, %v417
    %v422 = vpack.c.b16 %v420, %v419
    %v426 = vsel %vm90, %v408, 0
    %428 = vmatprep.subr.bf16.mxu0 0
    %429 = vmatpush1.bf16.msra.mxu0 %v421
    %430 = vmatprep.subr.bf16.mxu0 0
    %431 = vmatpush1.bf16.msra.mxu0 %v422
    %432 = vmatprep.subr.bf16.mxu0 0
    %433 = vmatpush1.bf16.msra.mxu0 0
    %434 = vmatprep.subr.bf16.mxu0 0
    %435 = vmatpush1.bf16.msra.mxu0 0
    %436 = vmatprep.subr.bf16.mxu0 0
    %437 = vmatpush1.bf16.msra.mxu0 0
    %438 = vmatprep.subr.bf16.mxu0 0
    %439 = vmatpush1.bf16.msra.mxu0 0
    %440 = vmatprep.subr.bf16.mxu0 0
    %441 = vmatpush1.bf16.msra.mxu0 0
    %442 = vmatprep.subr.bf16.mxu0 0
    %443 = vmatpush1.bf16.msra.mxu0 0
    %444 = vmatprep.subr.bf16.mxu0 0
    %445 = vmatpush1.bf16.msra.mxu0 0
    %446 = vmatprep.subr.bf16.mxu0 0
    %447 = vmatpush1.bf16.msra.mxu0 0
    %448 = vmatprep.subr.bf16.mxu0 0
    %449 = vmatpush1.bf16.msra.mxu0 0
    %450 = vmatprep.subr.bf16.mxu0 0
    %451 = vmatpush1.bf16.msra.mxu0 0
    %452 = vmatprep.subr.bf16.mxu0 0
    %453 = vmatpush1.bf16.msra.mxu0 0
    %454 = vmatprep.subr.bf16.mxu0 0
    %455 = vmatpush1.bf16.msra.mxu0 0
    %456 = vmatprep.subr.bf16.mxu0 0
    %457 = vmatpush1.bf16.msra.mxu0 0
    %458 = vmatprep.subr.bf16.mxu0 0
    %459 = vmatpush1.bf16.msra.mxu0 0
    %460 = vmatprep.mubr.bf16.mxu0 0
    %461 = vmatmul.mubr.bf16.gmra.mrb[0].mxu0 %v426
    %v462 = vpop.f32.mrb[0].mxu0
    %v463 = vadd.f32 0.0, %v462
    %v464 = vpop.f32.mrb[0].mxu0
    %v465 = vpop.f32.mrb[0].mxu0
    %v466 = vadd.f32 0.0, %v465
    %v467 = vpop.f32.mrb[0].mxu0
    %468 = vdwg.mxu0
    %v469 = vpack.c.bf16 %v463, %v463
    %v471 = vsel %vm140, %v469, 0
    %473 = vmatprep.subr.bf16.mxu0 0
    %474 = vmatpush1.bf16.msra.mxu0 %v471
    %475 = vmatprep.subr.bf16.mxu0 0
    %476 = vmatpush1.bf16.msra.mxu0 0
    %477 = vmatprep.subr.bf16.mxu0 0
    %478 = vmatpush1.bf16.msra.mxu0 0
    %479 = vmatprep.subr.bf16.mxu0 0
    %480 = vmatpush1.bf16.msra.mxu0 0
    %481 = vmatprep.subr.bf16.mxu0 0
    %482 = vmatpush1.bf16.msra.mxu0 0
    %483 = vmatprep.subr.bf16.mxu0 0
    %484 = vmatpush1.bf16.msra.mxu0 0
    %485 = vmatprep.subr.bf16.mxu0 0
    %486 = vmatpush1.bf16.msra.mxu0 0
    %487 = vmatprep.subr.bf16.mxu0 0
    %488 = vmatpush1.bf16.msra.mxu0 0
    %489 = vmatprep.subr.bf16.mxu0 0
    %490 = vmatpush1.bf16.msra.mxu0 0
    %491 = vmatprep.subr.bf16.mxu0 0
    %492 = vmatpush1.bf16.msra.mxu0 0
    %493 = vmatprep.subr.bf16.mxu0 0
    %494 = vmatpush1.bf16.msra.mxu0 0
    %495 = vmatprep.subr.bf16.mxu0 0
    %496 = vmatpush1.bf16.msra.mxu0 0
    %497 = vmatprep.subr.bf16.mxu0 0
    %498 = vmatpush1.bf16.msra.mxu0 0
    %499 = vmatprep.subr.bf16.mxu0 0
    %500 = vmatpush1.bf16.msra.mxu0 0
    %501 = vmatprep.subr.bf16.mxu0 0
    %502 = vmatpush1.bf16.msra.mxu0 0
    %503 = vmatprep.subr.bf16.mxu0 0
    %504 = vmatpush1.bf16.msra.mxu0 0
    %505 = vmatprep.mubr.bf16.mxu0 0
    %506 = vmatmul.mubr.bf16.gmra.mrb[0].mxu0 %v138
    %v507 = vpop.f32.mrb[0].mxu0
    %v508 = vadd.f32 0.0, %v507
    %v509 = vpop.f32.mrb[0].mxu0
    %v510 = vpop.f32.mrb[0].mxu0
    %v511 = vpop.f32.mrb[0].mxu0
    %512 = vdwg.mxu0
    %v513 = vpack.c.bf16 %v466, %v466
    %v515 = vsel %vm140, %v513, 0
    %517 = vmatprep.subr.bf16.mxu0 0
    %518 = vmatpush1.bf16.msra.mxu0 %v515
    %519 = vmatprep.subr.bf16.mxu0 0
    %520 = vmatpush1.bf16.msra.mxu0 0
    %521 = vmatprep.subr.bf16.mxu0 0
    %522 = vmatpush1.bf16.msra.mxu0 0
    %523 = vmatprep.subr.bf16.mxu0 0
    %524 = vmatpush1.bf16.msra.mxu0 0
    %525 = vmatprep.subr.bf16.mxu0 0
    %526 = vmatpush1.bf16.msra.mxu0 0
    %527 = vmatprep.subr.bf16.mxu0 0
    %528 = vmatpush1.bf16.msra.mxu0 0
    %529 = vmatprep.subr.bf16.mxu0 0
    %530 = vmatpush1.bf16.msra.mxu0 0
    %531 = vmatprep.subr.bf16.mxu0 0
    %532 = vmatpush1.bf16.msra.mxu0 0
    %533 = vmatprep.subr.bf16.mxu0 0
    %534 = vmatpush1.bf16.msra.mxu0 0
    %535 = vmatprep.subr.bf16.mxu0 0
    %536 = vmatpush1.bf16.msra.mxu0 0
    %537 = vmatprep.subr.bf16.mxu0 0
    %538 = vmatpush1.bf16.msra.mxu0 0
    %539 = vmatprep.subr.bf16.mxu0 0
    %540 = vmatpush1.bf16.msra.mxu0 0
    %541 = vmatprep.subr.bf16.mxu0 0
    %542 = vmatpush1.bf16.msra.mxu0 0
    %543 = vmatprep.subr.bf16.mxu0 0
    %544 = vmatpush1.bf16.msra.mxu0 0
    %545 = vmatprep.subr.bf16.mxu0 0
    %546 = vmatpush1.bf16.msra.mxu0 0
    %547 = vmatprep.subr.bf16.mxu0 0
    %548 = vmatpush1.bf16.msra.mxu0 0
    %549 = vmatprep.mubr.bf16.mxu0 0
    %550 = vmatmul.mubr.bf16.gmra.mrb[0].mxu0 %v138
    %v551 = vpop.f32.mrb[0].mxu0
    %v552 = vadd.f32 0.0, %v551
    %v553 = vpop.f32.mrb[0].mxu0
    %v554 = vpop.f32.mrb[0].mxu0
    %v555 = vpop.f32.mrb[0].mxu0
    %556 = vdwg.mxu0
    %v557 = vld [vmem:[#allocation6] sm:$0x1]
    %v559 = vlaneseq
    %v560 = vshrl.u32 %v559, 7
    %v561 = vsub.s32 0, %v560
    %v562 = vrot.slane %v557, %v561
    %v564 = vadd.f32 %v508, %v562
    %v565 = vadd.f32 %v552, %v562
    %v566 = vsel %vm90, %v564, 0.0
    %v567 = vrot.slane %v566, 4
    %v568 = vadd.f32 %v566, %v567
    %v569 = vrot.slane %v568, 2
    %v570 = vadd.f32 %v568, %v569
    %v571 = vrot.slane %v570, 1
    %v572 = vadd.f32 %v570, %v571
    %v573 = vrcp.pop 8.0
    %v574 = vmul.f32 %v572, %v573
    %v575 = vsub.f32 0.0, %v574
    %v576 = vmul.f32 %v575, 1.442695
    %v577 = vpow.pop %v576
    %v578 = vadd.f32 %v577, 1.0
    %v579 = vrcp.pop %v578
    %v580 = vmul.f32 1.0, %v579
    %v581 = vpack.c.bf16 %v580, %v580
    %v582 = vld [vmem:[%s8] sm:$0xf]
    %v583 = vld [vmem:[%s8 + $0x4] sm:$0xf]
    %v584 = vld [vmem:[%s8 + $0x8] sm:$0xf]
    %v585 = vld [vmem:[%s8 + $0xc] sm:$0xf]
    %v590 = vunpack.c.l.b16 %v582
    %v591 = vunpack.c.l.b16 %v583
    %v592 = vunpack.c.l.b16 %v584
    %v593 = vunpack.c.l.b16 %v585
    %v594 = vpack.c.b16 %v591, %v590
    %v595 = vpack.c.b16 %v593, %v592
    %v599 = vsel %vm90, %v581, 0
    %601 = vmatprep.subr.bf16.mxu0 0
    %602 = vmatpush1.bf16.msra.mxu0 %v594
    %603 = vmatprep.subr.bf16.mxu0 0
    %604 = vmatpush1.bf16.msra.mxu0 %v595
    %605 = vmatprep.subr.bf16.mxu0 0
    %606 = vmatpush1.bf16.msra.mxu0 0
    %607 = vmatprep.subr.bf16.mxu0 0
    %608 = vmatpush1.bf16.msra.mxu0 0
    %609 = vmatprep.subr.bf16.mxu0 0
    %610 = vmatpush1.bf16.msra.mxu0 0
    %611 = vmatprep.subr.bf16.mxu0 0
    %612 = vmatpush1.bf16.msra.mxu0 0
    %613 = vmatprep.subr.bf16.mxu0 0
    %614 = vmatpush1.bf16.msra.mxu0 0
    %615 = vmatprep.subr.bf16.mxu0 0
    %616 = vmatpush1.bf16.msra.mxu0 0
    %617 = vmatprep.subr.bf16.mxu0 0
    %618 = vmatpush1.bf16.msra.mxu0 0
    %619 = vmatprep.subr.bf16.mxu0 0
    %620 = vmatpush1.bf16.msra.mxu0 0
    %621 = vmatprep.subr.bf16.mxu0 0
    %622 = vmatpush1.bf16.msra.mxu0 0
    %623 = vmatprep.subr.bf16.mxu0 0
    %624 = vmatpush1.bf16.msra.mxu0 0
    %625 = vmatprep.subr.bf16.mxu0 0
    %626 = vmatpush1.bf16.msra.mxu0 0
    %627 = vmatprep.subr.bf16.mxu0 0
    %628 = vmatpush1.bf16.msra.mxu0 0
    %629 = vmatprep.subr.bf16.mxu0 0
    %630 = vmatpush1.bf16.msra.mxu0 0
    %631 = vmatprep.subr.bf16.mxu0 0
    %632 = vmatpush1.bf16.msra.mxu0 0
    %633 = vmatprep.mubr.bf16.mxu0 0
    %634 = vmatmul.mubr.bf16.gmra.mrb[0].mxu0 %v599
    %v635 = vpop.f32.mrb[0].mxu0
    %v636 = vadd.f32 0.0, %v635
    %v637 = vpop.f32.mrb[0].mxu0
    %v638 = vpop.f32.mrb[0].mxu0
    %v639 = vpop.f32.mrb[0].mxu0
    %640 = vdwg.mxu0
    %v641 = vlaneseq
    %v642 = vshrl.u32 %v641, 7
    %v643 = vsub.s32 0, %v642
    %v644 = vrot.slane %v636, %v643
    %v645 = vmul.f32 %v564, %v644
    %v646 = vmul.f32 %v565, %v644
    %v647 = vsel %vm90, %v645, 0.0
    %648 = vadd.xlane.f32.xlu0 %v647
    %v649 = vpop.xlane.xlu0 %648
    %v650 = vsel %vm90, %v646, 0.0
    %651 = vadd.xlane.f32.xlu0 %v650
    %v652 = vpop.xlane.xlu0 %651
    %s653 = sld [smem:[#allocation3]]
    %v654 = vstv %s653
    %v655 = vadd.f32 %v649, %v654
    %v656 = vadd.f32 %v652, %v654
    %vm657 = vcmask 7168
    %658 = vst.msk [vmem:[%s11] sm:$0xff] %vm657, %v655
    %659 = vst.msk [vmem:[%s11 + $0x8] sm:$0xff] %vm657, %v656
    // Predicated region
    $region54: #{dgi_forward.1} parent=1 // pred_check
      _
    $region55: #{dgi_forward.1} parent=1 // pred_check_branch
      %661 = sbr.rel (0) target = $region57
    $region56: #{dgi_forward.1} parent=1 // pred_region
      _
    $region57: #{dgi_forward.1} parent=1 // pred_fallthru
      _
    // Predicated region
    $region58: #{dgi_forward.1} parent=1 // pred_check
      _
    $region59: #{dgi_forward.1} parent=1 // pred_check_branch
      %663 = sbr.rel (0) target = $region61
    $region60: #{dgi_forward.1} parent=1 // pred_region
      _
    $region61: #{dgi_forward.1} parent=1 // pred_fallthru
      _
    %664 = vsyncpa [#allocation5], 1
    %665 = vsyncpa [#allocation7], 1

</llo_original>
